<compile_context>
chip_gen: v5e
topology: v5e:2x2
jax: 0.10.0
libtpu: 0.0.40
codegen_flags: <defaults>
</compile_context>

<pallas_src>
import jax
import jax.numpy as jnp
from jax.experimental import pallas as pl
from jax.experimental.pallas import tpu as pltpu

HIDDEN = 16
LANE_TILE = 128  # batch tile on the 128-lane axis


def _mlp_kernel(x_ref, w1_ref, b1_ref, w2_ref, b2_ref, w3_ref, b3_ref, o_ref):
    # x_ref : (1, TB)           batch on lanes
    # w1_ref: (H, 1)  b1_ref: (H, 1)
    # w2_ref: (H, H)  b2_ref: (H, 1)      (w2 is PyTorch (out, in) layout)
    # w3_ref: (H, 1)  b3_ref: (1, 1) in SMEM
    # o_ref : (1, TB)
    x = x_ref[...]  # (1, TB)

    # layer 1: K=1 matmul is an outer product -> pure VPU broadcast mul + add + ReLU.
    h1 = jnp.maximum(w1_ref[...] * x + b1_ref[...], 0.0)          # (H, TB)

    # layer 2: (H,H) @ (H,TB) on the MXU with f32 accumulate.
    h2 = jnp.dot(w2_ref[...], h1, preferred_element_type=jnp.float32)
    h2 = jnp.maximum(h2 + b2_ref[...], 0.0)                       # (H, TB)

    # layer 3: N=1 contraction -> VPU multiply + sublane reduce (XLU), scalar bias from SMEM.
    out = jnp.sum(w3_ref[...] * h2, axis=0, keepdims=True)        # (1, TB)
    o_ref[...] = (out + b3_ref[0, 0]).astype(o_ref.dtype)


def reciprocal_approximation(x, params, *, lane_tile=LANE_TILE):
    """x: (B, 1) float32. params stored in the kernel's lane-dense layout (see init_params)."""
    B = x.shape[0]
    H = params["w2"].shape[0]
    n_tiles = pl.cdiv(B, lane_tile)
    B_pad = n_tiles * lane_tile

    # Lane-dense layout: batch on the 128-lane axis, zero-padded to a full lane tile.
    xt = jnp.zeros((1, B_pad), x.dtype).at[0, :B].set(x[:, 0])

    w1, b1, w2, b2, w3, b3 = (params["w1"], params["b1"], params["w2"],
                              params["b2"], params["w3"], params["b3"])

    # Weights/biases: full-array blocks with constant index maps -> resident across grid steps.
    const = lambda a: pl.BlockSpec(a.shape, lambda j: (0,) * a.ndim)

    out_t = pl.pallas_call(
        _mlp_kernel,
        out_shape=jax.ShapeDtypeStruct((1, B_pad), x.dtype),
        grid=(n_tiles,),
        in_specs=[
            pl.BlockSpec((1, lane_tile), lambda j: (0, j)),          # x tile (lane dense)
            const(w1), const(b1), const(w2), const(b2), const(w3),
            pl.BlockSpec(memory_space=pltpu.MemorySpace.SMEM),       # b3 scalar in SMEM
        ],
        out_specs=pl.BlockSpec((1, lane_tile), lambda j: (0, j)),    # lane-dense output
        compiler_params=pltpu.CompilerParams(
            dimension_semantics=("parallel",)),                       # v7x: shard across 2 TCs
        cost_estimate=pl.CostEstimate(
            flops=2 * B_pad * (H + H * H + H),
            transcendentals=0,
            bytes_accessed=4 * (2 * B_pad + 3 * H + H * H + H + 1),
        ),
    )(xt, w1, b1, w2, b2, w3, b3)

    return out_t[0, :B].reshape(B, 1)


def init_params(key, hidden_size=HIDDEN):
    """PyTorch nn.Linear default init (uniform +/- 1/sqrt(fan_in)), stored in the
    kernel's lane-dense layout:
      w1: (H, 1), b1: (H, 1)   -- layer1.weight / bias
      w2: (H, H), b2: (H, 1)   -- layer2.weight (out, in) / bias
      w3: (H, 1), b3: (1, 1)   -- layer3.weight.T / bias
    """
    ks = jax.random.split(key, 6)

    def lin(kw, kb, fan_in, fan_out):
        bound = 1.0 / jnp.sqrt(jnp.float32(fan_in))
        w = jax.random.uniform(kw, (fan_out, fan_in), jnp.float32, -bound, bound)
        b = jax.random.uniform(kb, (fan_out, 1), jnp.float32, -bound, bound)
        return w, b

    w1, b1 = lin(ks[0], ks[1], 1, hidden_size)               # (H,1), (H,1)
    w2, b2 = lin(ks[2], ks[3], hidden_size, hidden_size)     # (H,H), (H,1)
    w3_pt, b3 = lin(ks[4], ks[5], hidden_size, 1)            # (1,H), (1,1)
    return {"w1": w1, "b1": b1, "w2": w2, "b2": b2, "w3": w3_pt.T, "b3": b3}


def reference_forward(x, p):
    """Pure-JAX reference matching the PyTorch module semantics (x: (B, 1))."""
    h1 = jnp.maximum(x @ p["w1"].T + p["b1"].T, 0.0)   # (B, H)
    h2 = jnp.maximum(h1 @ p["w2"].T + p["b2"].T, 0.0)  # (B, H)
    return h2 @ p["w3"] + p["b3"]                       # (B, 1)


if __name__ == "__main__":
    key = jax.random.PRNGKey(0)
    k_x, k_p = jax.random.split(key)

    hidden_size = 16
    batch = 8
    # Inputs in a range where a reciprocal approximation would be trained (positive scalars).
    x = jax.random.uniform(k_x, (batch, 1), jnp.float32, 0.5, 2.0)

    params = init_params(k_p, hidden_size)

    out = reciprocal_approximation(x, params)
    out = jax.block_until_ready(out)

    ref = reference_forward(x, params)
    assert out.shape == (batch, 1)
    assert jnp.allclose(out, ref, atol=1e-5, rtol=1e-5)

    print("KERNEL_OK")
</pallas_src>

<mosaic_0001>
module attributes {stable_mosaic.version = 11 : i64} {
  func.func @_mlp_kernel(%arg0: i32, %arg1: memref<1x128xf32, #tpu.memory_space<vmem>>, %arg2: memref<16x1xf32, #tpu.memory_space<vmem>>, %arg3: memref<16x1xf32, #tpu.memory_space<vmem>>, %arg4: memref<16x16xf32, #tpu.memory_space<vmem>>, %arg5: memref<16x1xf32, #tpu.memory_space<vmem>>, %arg6: memref<16x1xf32, #tpu.memory_space<vmem>>, %arg7: memref<1x1xf32, #tpu.memory_space<smem>>, %arg8: memref<1x128xf32, #tpu.memory_space<vmem>>) attributes {dimension_semantics = [#tpu.dimension_semantics<parallel>], iteration_bounds = array<i64: 1>, scalar_prefetch = 0 : i64, scratch_operands = 0 : i64, tpu.core_type = #tpu.core_type<tc>, window_params = [{transform_indices = @transform_0, window_bounds = array<i64: 1, 128>}, {pipeline_mode = #tpu.pipeline_mode<synchronous>, transform_indices = @transform_1, window_bounds = array<i64: 16, 1>}, {pipeline_mode = #tpu.pipeline_mode<synchronous>, transform_indices = @transform_2, window_bounds = array<i64: 16, 1>}, {pipeline_mode = #tpu.pipeline_mode<synchronous>, transform_indices = @transform_3, window_bounds = array<i64: 16, 16>}, {pipeline_mode = #tpu.pipeline_mode<synchronous>, transform_indices = @transform_4, window_bounds = array<i64: 16, 1>}, {pipeline_mode = #tpu.pipeline_mode<synchronous>, transform_indices = @transform_5, window_bounds = array<i64: 16, 1>}, {transform_indices = @transform_6, window_bounds = array<i64: 1, 1>}, {transform_indices = @transform_7, window_bounds = array<i64: 1, 128>}]} {
    %c0 = arith.constant 0 : index
    %c0_0 = arith.constant 0 : index
    %0 = vector.load %arg1[%c0, %c0_0] : memref<1x128xf32, #tpu.memory_space<vmem>>, vector<1x128xf32>
    %c0_1 = arith.constant 0 : index
    %c0_2 = arith.constant 0 : index
    %1 = vector.load %arg2[%c0_1, %c0_2] : memref<16x1xf32, #tpu.memory_space<vmem>>, vector<16x1xf32>
    %2 = vector.broadcast %1 : vector<16x1xf32> to vector<16x128xf32>
    %3 = vector.broadcast %0 : vector<1x128xf32> to vector<16x128xf32>
    %4 = arith.mulf %2, %3 : vector<16x128xf32>
    %c0_3 = arith.constant 0 : index
    %c0_4 = arith.constant 0 : index
    %5 = vector.load %arg3[%c0_3, %c0_4] : memref<16x1xf32, #tpu.memory_space<vmem>>, vector<16x1xf32>
    %6 = vector.broadcast %5 : vector<16x1xf32> to vector<16x128xf32>
    %7 = arith.addf %4, %6 : vector<16x128xf32>
    %cst = arith.constant 0.000000e+00 : f32
    %8 = vector.broadcast %cst : f32 to vector<16x128xf32>
    %9 = arith.maximumf %7, %8 : vector<16x128xf32>
    %c0_5 = arith.constant 0 : index
    %c0_6 = arith.constant 0 : index
    %10 = vector.load %arg4[%c0_5, %c0_6] : memref<16x16xf32, #tpu.memory_space<vmem>>, vector<16x16xf32>
    %cst_7 = arith.constant dense<0.000000e+00> : vector<16x128xf32>
    %11 = tpu.matmul %10, %9, %cst_7 {dimension_numbers = #tpu.dot_dimension_numbers<[1], [0], [0], [1], [0, 0, 1, 1], [], []>} : vector<16x16xf32>, vector<16x128xf32>, vector<16x128xf32> -> vector<16x128xf32>
    %c0_8 = arith.constant 0 : index
    %c0_9 = arith.constant 0 : index
    %12 = vector.load %arg5[%c0_8, %c0_9] : memref<16x1xf32, #tpu.memory_space<vmem>>, vector<16x1xf32>
    %13 = vector.broadcast %12 : vector<16x1xf32> to vector<16x128xf32>
    %14 = arith.addf %11, %13 : vector<16x128xf32>
    %cst_10 = arith.constant 0.000000e+00 : f32
    %15 = vector.broadcast %cst_10 : f32 to vector<16x128xf32>
    %16 = arith.maximumf %14, %15 : vector<16x128xf32>
    %c0_11 = arith.constant 0 : index
    %c0_12 = arith.constant 0 : index
    %17 = vector.load %arg6[%c0_11, %c0_12] : memref<16x1xf32, #tpu.memory_space<vmem>>, vector<16x1xf32>
    %18 = vector.broadcast %17 : vector<16x1xf32> to vector<16x128xf32>
    %19 = arith.mulf %18, %16 : vector<16x128xf32>
    %cst_13 = arith.constant dense<0.000000e+00> : vector<128xf32>
    %20 = vector.multi_reduction <add>, %19, %cst_13 [0] : vector<16x128xf32> to vector<128xf32>
    %21 = vector.shape_cast %20 : vector<128xf32> to vector<1x128xf32>
    %c0_14 = arith.constant 0 : index
    %c0_15 = arith.constant 0 : index
    %22 = memref.load %arg7[%c0_14, %c0_15] : memref<1x1xf32, #tpu.memory_space<smem>>
    %23 = vector.broadcast %22 : f32 to vector<1x128xf32>
    %24 = arith.addf %21, %23 : vector<1x128xf32>
    %c0_16 = arith.constant 0 : index
    %c0_17 = arith.constant 0 : index
    %25 = vector.load %arg8[%c0_16, %c0_17] : memref<1x128xf32, #tpu.memory_space<vmem>>, vector<1x128xf32>
    tpu.vector_store %arg8[%c0_16, %c0_17], %24 {strides = array<i32>} : memref<1x128xf32, #tpu.memory_space<vmem>>, vector<1x128xf32>,
    return
  }
  func.func @transform_0(%arg0: i32) -> (i32, i32) {
    %c0_i32 = arith.constant 0 : i32
    %c0_i32_0 = arith.constant 0 : i32
    return %c0_i32, %arg0 : i32, i32
  }
  func.func @transform_1(%arg0: i32) -> (i32, i32) {
    %c0_i32 = arith.constant 0 : i32
    %c0_i32_0 = arith.constant 0 : i32
    %c0_i32_1 = arith.constant 0 : i32
    return %c0_i32, %c0_i32_0 : i32, i32
  }
  func.func @transform_2(%arg0: i32) -> (i32, i32) {
    %c0_i32 = arith.constant 0 : i32
    %c0_i32_0 = arith.constant 0 : i32
    %c0_i32_1 = arith.constant 0 : i32
    return %c0_i32, %c0_i32_0 : i32, i32
  }
  func.func @transform_3(%arg0: i32) -> (i32, i32) {
    %c0_i32 = arith.constant 0 : i32
    %c0_i32_0 = arith.constant 0 : i32
    %c0_i32_1 = arith.constant 0 : i32
    return %c0_i32, %c0_i32_0 : i32, i32
  }
  func.func @transform_4(%arg0: i32) -> (i32, i32) {
    %c0_i32 = arith.constant 0 : i32
    %c0_i32_0 = arith.constant 0 : i32
    %c0_i32_1 = arith.constant 0 : i32
    return %c0_i32, %c0_i32_0 : i32, i32
  }
  func.func @transform_5(%arg0: i32) -> (i32, i32) {
    %c0_i32 = arith.constant 0 : i32
    %c0_i32_0 = arith.constant 0 : i32
    %c0_i32_1 = arith.constant 0 : i32
    return %c0_i32, %c0_i32_0 : i32, i32
  }
  func.func @transform_6(%arg0: i32) -> (i32, i32) {
    %c0_i32 = arith.constant 0 : i32
    %c0_i32_0 = arith.constant 0 : i32
    %c0_i32_1 = arith.constant 0 : i32
    return %c0_i32, %c0_i32_0 : i32, i32
  }
  func.func @transform_7(%arg0: i32) -> (i32, i32) {
    %c0_i32 = arith.constant 0 : i32
    %c0_i32_0 = arith.constant 0 : i32
    return %c0_i32, %arg0 : i32, i32
  }
}

</mosaic_0001>

<llo_original>
// kernel: tpu_custom_call.1
$region0: #{tpu_custom_call.1}
  #allocation0 [shape = 'u32[]', space=smem, size = 0x4, offset = 0x4, fixed_abs, tag = 'smem constant byte address 0x4 - core index']
  #allocation1 [shape = 'u32[72,128]{1,0:T(1,128)}', space=vmem, size = 0x9000, scoped, tag = 'internal scratch']
  #allocation2 [shape = 'f32[1,1]{1,0:T(1,128)S(6)}', space=smem, size = 0x200, scoped, tag = 'scoped memory for tpu_custom_call.1']
  %s0 = inlined_call_operand.vmem [shape: f32[1,128], index: 0, kind: input, shape index: {}]
  %s1 = inlined_call_operand.vmem [shape: f32[16,1], index: 1, kind: input, shape index: {}]
  %s2 = inlined_call_operand.vmem [shape: f32[16,1], index: 2, kind: input, shape index: {}]
  %s3 = inlined_call_operand.vmem [shape: f32[16,16], index: 3, kind: input, shape index: {}]
  %s4 = inlined_call_operand.vmem [shape: f32[16,1], index: 4, kind: input, shape index: {}]
  %s5 = inlined_call_operand.vmem [shape: f32[16,1], index: 5, kind: input, shape index: {}]
  %s6 = inlined_call_operand.<no memory space> [shape: f32[1,1], index: 6, kind: input, shape index: {}]
  %s7 = inlined_call_operand.hbm [shape: f32[1,128], index: 7, kind: output, shape index: {}]
  %s8 = sld [smem:[#allocation0]]
  $region38: #{tpu_custom_call.1} parent=0
    _
  %s10 = ssub.s32 1, %s8
  %s11 = scalar_select 0, %s10, %s8
  %12 = sst [smem:[#allocation2]] %s6
  $region1: #{tpu_custom_call.1} parent=0
    #allocation3 [shape = 'u8[512]{0}', space=vmem, size = 0x400, scoped, tag = 'output window, operand 0, single buffered']
    #allocation4 [shape = 's32[1]{0}', space=sflag, size = 0x4, scoped, tag = 'scoped memory for tpu_custom_call.1']
    %13 = vsyncpa [#allocation4], 0
    // Predicated region
    $region2: #{tpu_custom_call.1} parent=1 // pred_check
      _
    $region3: #{tpu_custom_call.1} parent=1 // pred_check_branch
      %15 = sbr.rel (0) target = $region5
    $region4: #{tpu_custom_call.1} parent=1 // pred_region
      _
    $region5: #{tpu_custom_call.1} parent=1 // pred_fallthru
      _
    // Predicated region
    $region6: #{tpu_custom_call.1} parent=1 // pred_check
      _
    $region7: #{tpu_custom_call.1} parent=1 // pred_check_branch
      %17 = sbr.rel (0) target = $region9
    $region8: #{tpu_custom_call.1} parent=1 // pred_region
      _
    $region9: #{tpu_custom_call.1} parent=1 // pred_fallthru
      _
    // Predicated region
    $region10: #{tpu_custom_call.1} parent=1 // pred_check
      _
    $region11: #{tpu_custom_call.1} parent=1 // pred_check_branch
      %19 = sbr.rel (0) target = $region13
    $region12: #{tpu_custom_call.1} parent=1 // pred_region
      _
    $region13: #{tpu_custom_call.1} parent=1 // pred_fallthru
      _
    // Predicated region
    $region14: #{tpu_custom_call.1} parent=1 // pred_check
      _
    $region15: #{tpu_custom_call.1} parent=1 // pred_check_branch
      %21 = sbr.rel (0) target = $region17
    $region16: #{tpu_custom_call.1} parent=1 // pred_region
      _
    $region17: #{tpu_custom_call.1} parent=1 // pred_fallthru
      _
    // Predicated region
    $region18: #{tpu_custom_call.1} parent=1 // pred_check
      _
    $region19: #{tpu_custom_call.1} parent=1 // pred_check_branch
      %23 = sbr.rel (0) target = $region21
    $region20: #{tpu_custom_call.1} parent=1 // pred_region
      _
    $region21: #{tpu_custom_call.1} parent=1 // pred_fallthru
      _
    // Predicated region
    $region22: #{tpu_custom_call.1} parent=1 // pred_check
      _
    $region23: #{tpu_custom_call.1} parent=1 // pred_check_branch
      %25 = sbr.rel (0) target = $region25
    $region24: #{tpu_custom_call.1} parent=1 // pred_region
      _
    $region25: #{tpu_custom_call.1} parent=1 // pred_fallthru
      _
    // Predicated region
    $region26: #{tpu_custom_call.1} parent=1 // pred_check
      _
    $region27: #{tpu_custom_call.1} parent=1 // pred_check_branch
      %27 = sbr.rel (0) target = $region29
    $region28: #{tpu_custom_call.1} parent=1 // pred_region
      _
    $region29: #{tpu_custom_call.1} parent=1 // pred_fallthru
      _
    %v28 = vld [vmem:[%s0] sm:$0x1]
    %v29 = vld [vmem:[%s1] sm:$0xff]
    %v30 = vld [vmem:[%s1 + $0x8] sm:$0xff]
    %32 = vset.pattern.permute.xlu0 0
    %33 = vperm.xlu0 %32, %v29
    %v34 = vpop.permute.xlu0 %33
    %37 = vset.pattern.permute.xlu0 0
    %38 = vperm.xlu0 %37, %v30
    %v39 = vpop.permute.xlu0 %38
    %v42 = vperm.slane %v28, 0
    %v44 = vmul.f32 %v34, %v42
    %v45 = vmul.f32 %v39, %v42
    %v46 = vld [vmem:[%s2] sm:$0xff]
    %v47 = vld [vmem:[%s2 + $0x8] sm:$0xff]
    %49 = vset.pattern.permute.xlu0 0
    %50 = vperm.xlu0 %49, %v46
    %v51 = vpop.permute.xlu0 %50
    %54 = vset.pattern.permute.xlu0 0
    %55 = vperm.xlu0 %54, %v47
    %v56 = vpop.permute.xlu0 %55
    %v58 = vadd.f32 %v44, %v51
    %v59 = vadd.f32 %v45, %v56
    %v60 = vmax.f32 %v58, 0.0
    %v61 = vmax.f32 %v59, 0.0
    %v62 = vld [vmem:[%s3] sm:$0xff]
    %v63 = vld [vmem:[%s3 + $0x8] sm:$0xff]
    %v64 = vld [vmem:[%s4] sm:$0xff]
    %v65 = vld [vmem:[%s4 + $0x8] sm:$0xff]
    %67 = vset.pattern.permute.xlu0 0
    %68 = vperm.xlu0 %67, %v64
    %v69 = vpop.permute.xlu0 %68
    %72 = vset.pattern.permute.xlu0 0
    %73 = vperm.xlu0 %72, %v65
    %v74 = vpop.permute.xlu0 %73
    %vm76 = vcmask 130048
    %v78 = vsel %vm76, %v62, 0
    %v81 = vsel %vm76, %v63, 0
    %83 = vmatpush.msra.mxu0 0.0
    %84 = vmatpush.msra.mxu0 0.0
    %85 = vmatpush.msra.mxu0 0.0
    %86 = vmatpush.msra.mxu0 0.0
    %87 = vmatpush.msra.mxu0 0.0
    %88 = vmatpush.msra.mxu0 0.0
    %89 = vmatpush.msra.mxu0 0.0
    %90 = vmatpush.msra.mxu0 0.0
    %91 = vmatpush.msra.mxu0 0.0
    %92 = vmatpush.msra.mxu0 0.0
    %93 = vmatpush.msra.mxu0 0.0
    %94 = vmatpush.msra.mxu0 0.0
    %95 = vmatpush.msra.mxu0 0.0
    %96 = vmatpush.msra.mxu0 0.0
    %97 = vmatpush.msra.mxu0 %v61
    %98 = vmatpush.msra.mxu0 %v60
    %99 = vmatmul.f32.gmra.mxu0 %v78
    %v100 = vpop.f32.mrf.mxu0
    %v101 = vadd.f32 %v69, %v100
    %102 = vmatmul.f32.gmra.mxu0 %v81
    %v103 = vpop.f32.mrf.mxu0
    %v104 = vadd.f32 %v74, %v103
    %105 = vdwg.mxu0
    %v106 = vmax.f32 %v101, 0.0
    %v107 = vmax.f32 %v104, 0.0
    %v108 = vld [vmem:[%s5] sm:$0xff]
    %v109 = vld [vmem:[%s5 + $0x8] sm:$0xff]
    %111 = vset.pattern.permute.xlu0 0
    %112 = vperm.xlu0 %111, %v108
    %v113 = vpop.permute.xlu0 %112
    %116 = vset.pattern.permute.xlu0 0
    %117 = vperm.xlu0 %116, %v109
    %v118 = vpop.permute.xlu0 %117
    %v120 = vmul.f32 %v113, %v106
    %v121 = vmul.f32 %v118, %v107
    %v122 = vadd.f32 %v120, %v121
    %v123 = vrot.slane %v122, 4
    %v124 = vadd.f32 %v122, %v123
    %v125 = vrot.slane %v124, 2
    %v126 = vadd.f32 %v124, %v125
    %v127 = vrot.slane %v126, 1
    %v128 = vadd.f32 %v126, %v127
    %s129 = sld [smem:[#allocation2]]
    %v130 = vstv %s129
    %v131 = vadd.f32 %v128, %v130
    %132 = vst [vmem:[#allocation3] sm:$0x1] %v131
    // Predicated region
    $region30: #{tpu_custom_call.1} parent=1 // pred_check
      _
    $region31: #{tpu_custom_call.1} parent=1 // pred_check_branch
      %134 = sbr.rel (0) target = $region33
    $region32: #{tpu_custom_call.1} parent=1 // pred_region
      %136 = vsyncadd [#allocation4], 0
      %s138 = sshll.u32 [#allocation3], 4
      %s139 = int_to_ptr.vmem [resolvable:$true] %s138
      %s140 = sshll.u32 %s7, 4
      %s141 = int_to_ptr.hbm [resolvable:$true] %s140
      %143 = dma.vmem_to_hbm [thread:$0]  %s139, 16, %s141, [#allocation4]
    $region33: #{tpu_custom_call.1} parent=1 // pred_fallthru
      _
    // Predicated region
    $region34: #{tpu_custom_call.1} parent=1 // pred_check
      _
    $region35: #{tpu_custom_call.1} parent=1 // pred_check_branch
      %145 = sbr.rel (0) target = $region37
    $region36: #{tpu_custom_call.1} parent=1 // pred_region
      %147 = dma.done [#allocation4], 16
    $region37: #{tpu_custom_call.1} parent=1 // pred_fallthru
      _
    %148 = vsyncpa [#allocation4], 1

</llo_original>
